<compile_context>
chip_gen: v6e
topology: v6e:2x2x1
jax: 0.10.0
libtpu: 0.0.40
codegen_flags: <defaults>
</compile_context>

<pallas_src>
import functools

import jax
import jax.numpy as jnp
from jax import lax
from jax.experimental import pallas as pl
from jax.experimental.pallas import tpu as pltpu


def _classifier_kernel(x_ref, w_ref, *rest, num_heads: int, has_bias: bool):
    if has_bias:
        b_ref, logits_ref, conf_ref, logconf_ref = rest
    else:
        logits_ref, conf_ref, logconf_ref = rest

    x = x_ref[...]                        # [tb, F]  bf16 (or f32)
    w = w_ref[...]                        # [F, C]   bf16 (or f32), pre-transposed

    # bf16 MXU matmul with f32 accumulation.
    logits = lax.dot_general(
        x, w,
        dimension_numbers=(((1,), (0,)), ((), ())),
        preferred_element_type=jnp.float32,
    )                                     # [tb, C] f32
    if has_bias:
        logits = logits + b_ref[...]      # [1, C] f32 broadcast add

    tb, num_classes = logits.shape
    ch = num_classes // num_heads

    # Per-head softmax over contiguous column groups, written head-major into
    # (H, tb, ch) output blocks.  H is small and static -> loop unrolls at
    # trace time; reductions are per-head width, not full [tb, C] masked work.
    for h in range(num_heads):
        lh = logits[:, h * ch:(h + 1) * ch]            # [tb, ch] static slice
        m = jnp.max(lh, axis=1, keepdims=True)         # [tb, 1]
        shifted = lh - m
        e = jnp.exp(shifted)
        s = jnp.sum(e, axis=1, keepdims=True)          # [tb, 1]
        inv_s = 1.0 / s                                # exact division (fix)
        log_s = jnp.log(s)                             # EUP count ~H, not ~C
        logits_ref[h] = lh
        conf_ref[h] = e * inv_s
        logconf_ref[h] = shifted - log_s


def _round_up(v: int, m: int) -> int:
    return ((v + m - 1) // m) * m


def _choose_batch_tile(batch: int, cap: int) -> int:
    """Sublane-aligned batch tile; prefer >=2 grid steps (v7x megacore)."""
    if batch <= 8:
        return batch                      # whole (tiny) batch, one grid step
    if batch > cap:
        return cap                        # cap is a multiple of 8
    half = _round_up(-(-batch // 2), 8)
    return half if half < batch else batch


def _vmem_footprint_bytes(tb: int, feat: int, ncls: int, in_itemsize: int) -> int:
    x_b = 2 * tb * feat * in_itemsize          # double-buffered x tile
    w_b = 2 * feat * ncls * in_itemsize        # resident W (assume 2 buffers)
    bias_b = 2 * ncls * 4
    out_b = 3 * 2 * tb * ncls * 4              # three double-buffered f32 outputs
    tmp_b = 8 * tb * ncls * 4                  # in-kernel f32 temporaries
    return x_b + w_b + bias_b + out_b + tmp_b


def softmax_classifier_forward(x, weight, bias, num_heads: int, *,
                               matmul_dtype=jnp.bfloat16,
                               batch_tile_cap: int = 256):
    """Pallas implementation of SoftmaxClassifier.forward.

    Args:
      x:      [B, F] activations.
      weight: [C, F] nn.Linear weight (out_features x in_features).
      bias:   [C] or None (use_bias=False).
      num_heads: must divide C.
      matmul_dtype: MXU operand dtype (bf16 by default; accumulation is f32).

    Returns:
      dict with 'logits', 'confidences', 'log_confidences':
        [B, C] if num_heads == 1, else [H*B, C//H] (torch split/cat order).
    """
    B, F = x.shape
    C, Fw = weight.shape
    assert F == Fw, "feature_dim mismatch"
    assert C % num_heads == 0, "num_heads must divide num_classes"
    ch = C // num_heads
    has_bias = bias is not None

    # bf16 MXU operands; W pre-transposed ONCE in the wrapper to [F, C] so the
    # kernel never relayouts it per grid step.
    xm = x.astype(matmul_dtype)
    wm = weight.T.astype(matmul_dtype)
    in_itemsize = jnp.dtype(matmul_dtype).itemsize

    # VMEM budget from the (approximate) real footprint, capped per chip.
    try:
        phys_vmem = pltpu.get_tpu_info().vmem_capacity_bytes
    except Exception:
        phys_vmem = 64 << 20                       # conservative (v7x) fallback
    vmem_cap = (phys_vmem * 3) // 4                # ~48 MiB on v7x, ~96 MiB on v5e/v6e

    tb = _choose_batch_tile(B, batch_tile_cap)
    while _vmem_footprint_bytes(tb, F, C, in_itemsize) > vmem_cap and tb > 8:
        tb = max(8, _round_up(tb // 2, 8))
    footprint = _vmem_footprint_bytes(tb, F, C, in_itemsize)
    vmem_limit = int(min(max(footprint * 5 // 4, 32 << 20), vmem_cap))
    # TODO(synk): for very large F*C (resident W alone exceeding the budget) a
    # feature-axis (K) tiled accumulator variant would be needed.

    grid = (pl.cdiv(B, tb),)

    in_specs = [
        pl.BlockSpec((tb, F), lambda i: (i, 0)),   # x: batch-tiled, pipelined
        pl.BlockSpec((F, C), lambda i: (0, 0)),    # W: resident across grid
    ]
    operands = [xm, wm]
    if has_bias:
        in_specs.append(pl.BlockSpec((1, C), lambda i: (0, 0)))
        operands.append(bias.reshape(1, C).astype(jnp.float32))

    out_spec = pl.BlockSpec((num_heads, tb, ch), lambda i: (0, i, 0))
    out_shape = tuple(
        jax.ShapeDtypeStruct((num_heads, B, ch), jnp.float32) for _ in range(3))

    cost = pl.CostEstimate(
        flops=2 * B * F * C + 6 * B * C,
        transcendentals=B * C + 2 * B * num_heads,
        bytes_accessed=(B * F + F * C) * in_itemsize + C * 4 + 3 * B * C * 4,
    )

    logits_hm, conf_hm, logconf_hm = pl.pallas_call(
        functools.partial(_classifier_kernel,
                          num_heads=num_heads, has_bias=has_bias),
        out_shape=out_shape,
        grid=grid,
        in_specs=in_specs,
        out_specs=(out_spec, out_spec, out_spec),
        compiler_params=pltpu.CompilerParams(
            dimension_semantics=("parallel",),
            vmem_limit_bytes=vmem_limit,
        ),
        cost_estimate=cost,
    )(*operands)

    # Head-major (H, B, ch) -> (H*B, ch) is a free contiguous reshape and is
    # exactly torch.cat(torch.split(logits, C//H, dim=1), dim=0).
    def flatten(a):
        return a.reshape(num_heads * B, ch)

    return {
        "logits": flatten(logits_hm),
        "confidences": flatten(conf_hm),
        "log_confidences": flatten(logconf_hm),
    }


def _reference_forward(x, weight, bias, num_heads, matmul_dtype=jnp.bfloat16):
    # Matches the kernel's precision choice: bf16 operands, f32 accumulation.
    logits = jnp.dot(x.astype(matmul_dtype), weight.astype(matmul_dtype).T,
                     preferred_element_type=jnp.float32)
    if bias is not None:
        logits = logits + bias[None, :].astype(jnp.float32)
    C = weight.shape[0]
    ch = C // num_heads
    if num_heads > 1:
        logits = jnp.concatenate(
            [logits[:, h * ch:(h + 1) * ch] for h in range(num_heads)], axis=0)
    return (logits,
            jax.nn.softmax(logits, axis=1),
            jax.nn.log_softmax(logits, axis=1))


if __name__ == "__main__":
    # Module config: feature_dim=32, num_classes=8, num_heads=2, use_bias=True
    B, F, C, H = 2, 32, 8, 2

    key = jax.random.PRNGKey(0)
    kx, kw, kb = jax.random.split(key, 3)
    x = jax.random.normal(kx, (B, F), dtype=jnp.float32)
    # Deterministic synthetic "Linear" parameters (not a checkpoint load).
    weight = jax.random.normal(kw, (C, F), dtype=jnp.float32) * (1.0 / jnp.sqrt(F))
    bias = jax.random.normal(kb, (C,), dtype=jnp.float32) * 0.01

    out = softmax_classifier_forward(x, weight, bias, num_heads=H)
    jax.block_until_ready(out)

    ref_logits, ref_conf, ref_logc = _reference_forward(x, weight, bias, H)
    assert out["logits"].shape == ref_logits.shape
    assert jnp.allclose(out["logits"], ref_logits, atol=1e-4, rtol=1e-4)
    assert jnp.allclose(out["confidences"], ref_conf, atol=1e-4, rtol=1e-4)
    assert jnp.allclose(out["log_confidences"], ref_logc, atol=1e-4, rtol=1e-4)

    print("KERNEL_OK")
</pallas_src>

<mosaic_0001>
module attributes {stable_mosaic.version = 11 : i64} {
  func.func @_classifier_kernel(%arg0: i32, %arg1: memref<2x32xbf16, #tpu.memory_space<vmem>>, %arg2: memref<32x8xbf16, #tpu.memory_space<vmem>>, %arg3: memref<1x8xf32, #tpu.memory_space<vmem>>, %arg4: memref<2x2x4xf32, #tpu.memory_space<vmem>>, %arg5: memref<2x2x4xf32, #tpu.memory_space<vmem>>, %arg6: memref<2x2x4xf32, #tpu.memory_space<vmem>>) attributes {dimension_semantics = [#tpu.dimension_semantics<parallel>], iteration_bounds = array<i64: 1>, scalar_prefetch = 0 : i64, scratch_operands = 0 : i64, tpu.core_type = #tpu.core_type<tc>, window_params = [{transform_indices = @transform_0, window_bounds = array<i64: 2, 32>}, {pipeline_mode = #tpu.pipeline_mode<synchronous>, transform_indices = @transform_1, window_bounds = array<i64: 32, 8>}, {pipeline_mode = #tpu.pipeline_mode<synchronous>, transform_indices = @transform_2, window_bounds = array<i64: 1, 8>}, {transform_indices = @transform_3, window_bounds = array<i64: 2, 2, 4>}, {transform_indices = @transform_4, window_bounds = array<i64: 2, 2, 4>}, {transform_indices = @transform_5, window_bounds = array<i64: 2, 2, 4>}]} {
    %c0 = arith.constant 0 : index
    %c0_0 = arith.constant 0 : index
    %0 = vector.load %arg1[%c0, %c0_0] : memref<2x32xbf16, #tpu.memory_space<vmem>>, vector<2x32xbf16>
    %c0_1 = arith.constant 0 : index
    %c0_2 = arith.constant 0 : index
    %1 = vector.load %arg2[%c0_1, %c0_2] : memref<32x8xbf16, #tpu.memory_space<vmem>>, vector<32x8xbf16>
    %cst = arith.constant dense<0.000000e+00> : vector<2x8xf32>
    %2 = tpu.matmul %0, %1, %cst {dimension_numbers = #tpu.dot_dimension_numbers<[1], [0], [0], [1], [0, 0, 1, 1], [], []>} : vector<2x32xbf16>, vector<32x8xbf16>, vector<2x8xf32> -> vector<2x8xf32>
    %c0_3 = arith.constant 0 : index
    %c0_4 = arith.constant 0 : index
    %3 = vector.load %arg3[%c0_3, %c0_4] : memref<1x8xf32, #tpu.memory_space<vmem>>, vector<1x8xf32>
    %4 = vector.broadcast %3 : vector<1x8xf32> to vector<2x8xf32>
    %5 = arith.addf %2, %4 : vector<2x8xf32>
    %6 = vector.extract_strided_slice %5 {offsets = [0, 0], sizes = [2, 4], strides = [1, 1]} : vector<2x8xf32> to vector<2x4xf32>
    %cst_5 = arith.constant dense<0xFF800000> : vector<2xf32>
    %7 = vector.multi_reduction <maximumf>, %6, %cst_5 [1] : vector<2x4xf32> to vector<2xf32>
    %8 = vector.shape_cast %7 : vector<2xf32> to vector<2x1xf32>
    %9 = vector.broadcast %8 : vector<2x1xf32> to vector<2x4xf32>
    %10 = arith.subf %6, %9 : vector<2x4xf32>
    %11 = math.exp %10 : vector<2x4xf32>
    %cst_6 = arith.constant dense<0.000000e+00> : vector<2xf32>
    %12 = vector.multi_reduction <add>, %11, %cst_6 [1] : vector<2x4xf32> to vector<2xf32>
    %13 = vector.shape_cast %12 : vector<2xf32> to vector<2x1xf32>
    %cst_7 = arith.constant 1.000000e+00 : f32
    %14 = vector.broadcast %cst_7 : f32 to vector<2x1xf32>
    %15 = arith.divf %14, %13 : vector<2x1xf32>
    %16 = math.log %13 : vector<2x1xf32>
    %c0_8 = arith.constant 0 : index
    %c0_9 = arith.constant 0 : index
    %c0_10 = arith.constant 0 : index
    %17 = vector.load %arg4[%c0_8, %c0_9, %c0_10] : memref<2x2x4xf32, #tpu.memory_space<vmem>>, vector<1x2x4xf32>
    %18 = vector.shape_cast %17 : vector<1x2x4xf32> to vector<2x4xf32>
    %19 = vector.shape_cast %6 : vector<2x4xf32> to vector<1x2x4xf32>
    tpu.vector_store %arg4[%c0_8, %c0_9, %c0_10], %19 {strides = array<i32>} : memref<2x2x4xf32, #tpu.memory_space<vmem>>, vector<1x2x4xf32>,
    %20 = vector.broadcast %15 : vector<2x1xf32> to vector<2x4xf32>
    %21 = arith.mulf %11, %20 : vector<2x4xf32>
    %c0_11 = arith.constant 0 : index
    %c0_12 = arith.constant 0 : index
    %c0_13 = arith.constant 0 : index
    %22 = vector.load %arg5[%c0_11, %c0_12, %c0_13] : memref<2x2x4xf32, #tpu.memory_space<vmem>>, vector<1x2x4xf32>
    %23 = vector.shape_cast %22 : vector<1x2x4xf32> to vector<2x4xf32>
    %24 = vector.shape_cast %21 : vector<2x4xf32> to vector<1x2x4xf32>
    tpu.vector_store %arg5[%c0_11, %c0_12, %c0_13], %24 {strides = array<i32>} : memref<2x2x4xf32, #tpu.memory_space<vmem>>, vector<1x2x4xf32>,
    %25 = vector.broadcast %16 : vector<2x1xf32> to vector<2x4xf32>
    %26 = arith.subf %10, %25 : vector<2x4xf32>
    %c0_14 = arith.constant 0 : index
    %c0_15 = arith.constant 0 : index
    %c0_16 = arith.constant 0 : index
    %27 = vector.load %arg6[%c0_14, %c0_15, %c0_16] : memref<2x2x4xf32, #tpu.memory_space<vmem>>, vector<1x2x4xf32>
    %28 = vector.shape_cast %27 : vector<1x2x4xf32> to vector<2x4xf32>
    %29 = vector.shape_cast %26 : vector<2x4xf32> to vector<1x2x4xf32>
    tpu.vector_store %arg6[%c0_14, %c0_15, %c0_16], %29 {strides = array<i32>} : memref<2x2x4xf32, #tpu.memory_space<vmem>>, vector<1x2x4xf32>,
    %30 = vector.extract_strided_slice %5 {offsets = [0, 4], sizes = [2, 4], strides = [1, 1]} : vector<2x8xf32> to vector<2x4xf32>
    %cst_17 = arith.constant dense<0xFF800000> : vector<2xf32>
    %31 = vector.multi_reduction <maximumf>, %30, %cst_17 [1] : vector<2x4xf32> to vector<2xf32>
    %32 = vector.shape_cast %31 : vector<2xf32> to vector<2x1xf32>
    %33 = vector.broadcast %32 : vector<2x1xf32> to vector<2x4xf32>
    %34 = arith.subf %30, %33 : vector<2x4xf32>
    %35 = math.exp %34 : vector<2x4xf32>
    %cst_18 = arith.constant dense<0.000000e+00> : vector<2xf32>
    %36 = vector.multi_reduction <add>, %35, %cst_18 [1] : vector<2x4xf32> to vector<2xf32>
    %37 = vector.shape_cast %36 : vector<2xf32> to vector<2x1xf32>
    %cst_19 = arith.constant 1.000000e+00 : f32
    %38 = vector.broadcast %cst_19 : f32 to vector<2x1xf32>
    %39 = arith.divf %38, %37 : vector<2x1xf32>
    %40 = math.log %37 : vector<2x1xf32>
    %c1 = arith.constant 1 : index
    %c0_20 = arith.constant 0 : index
    %c0_21 = arith.constant 0 : index
    %41 = vector.load %arg4[%c1, %c0_20, %c0_21] : memref<2x2x4xf32, #tpu.memory_space<vmem>>, vector<1x2x4xf32>
    %42 = vector.shape_cast %41 : vector<1x2x4xf32> to vector<2x4xf32>
    %43 = vector.shape_cast %30 : vector<2x4xf32> to vector<1x2x4xf32>
    tpu.vector_store %arg4[%c1, %c0_20, %c0_21], %43 {strides = array<i32>} : memref<2x2x4xf32, #tpu.memory_space<vmem>>, vector<1x2x4xf32>,
    %44 = vector.broadcast %39 : vector<2x1xf32> to vector<2x4xf32>
    %45 = arith.mulf %35, %44 : vector<2x4xf32>
    %c1_22 = arith.constant 1 : index
    %c0_23 = arith.constant 0 : index
    %c0_24 = arith.constant 0 : index
    %46 = vector.load %arg5[%c1_22, %c0_23, %c0_24] : memref<2x2x4xf32, #tpu.memory_space<vmem>>, vector<1x2x4xf32>
    %47 = vector.shape_cast %46 : vector<1x2x4xf32> to vector<2x4xf32>
    %48 = vector.shape_cast %45 : vector<2x4xf32> to vector<1x2x4xf32>
    tpu.vector_store %arg5[%c1_22, %c0_23, %c0_24], %48 {strides = array<i32>} : memref<2x2x4xf32, #tpu.memory_space<vmem>>, vector<1x2x4xf32>,
    %49 = vector.broadcast %40 : vector<2x1xf32> to vector<2x4xf32>
    %50 = arith.subf %34, %49 : vector<2x4xf32>
    %c1_25 = arith.constant 1 : index
    %c0_26 = arith.constant 0 : index
    %c0_27 = arith.constant 0 : index
    %51 = vector.load %arg6[%c1_25, %c0_26, %c0_27] : memref<2x2x4xf32, #tpu.memory_space<vmem>>, vector<1x2x4xf32>
    %52 = vector.shape_cast %51 : vector<1x2x4xf32> to vector<2x4xf32>
    %53 = vector.shape_cast %50 : vector<2x4xf32> to vector<1x2x4xf32>
    tpu.vector_store %arg6[%c1_25, %c0_26, %c0_27], %53 {strides = array<i32>} : memref<2x2x4xf32, #tpu.memory_space<vmem>>, vector<1x2x4xf32>,
    return
  }
  func.func @transform_0(%arg0: i32) -> (i32, i32) {
    %c0_i32 = arith.constant 0 : i32
    %c0_i32_0 = arith.constant 0 : i32
    return %arg0, %c0_i32 : i32, i32
  }
  func.func @transform_1(%arg0: i32) -> (i32, i32) {
    %c0_i32 = arith.constant 0 : i32
    %c0_i32_0 = arith.constant 0 : i32
    %c0_i32_1 = arith.constant 0 : i32
    return %c0_i32, %c0_i32_0 : i32, i32
  }
  func.func @transform_2(%arg0: i32) -> (i32, i32) {
    %c0_i32 = arith.constant 0 : i32
    %c0_i32_0 = arith.constant 0 : i32
    %c0_i32_1 = arith.constant 0 : i32
    return %c0_i32, %c0_i32_0 : i32, i32
  }
  func.func @transform_3(%arg0: i32) -> (i32, i32, i32) {
    %c0_i32 = arith.constant 0 : i32
    %c0_i32_0 = arith.constant 0 : i32
    %c0_i32_1 = arith.constant 0 : i32
    return %c0_i32, %arg0, %c0_i32_0 : i32, i32, i32
  }
  func.func @transform_4(%arg0: i32) -> (i32, i32, i32) {
    %c0_i32 = arith.constant 0 : i32
    %c0_i32_0 = arith.constant 0 : i32
    %c0_i32_1 = arith.constant 0 : i32
    return %c0_i32, %arg0, %c0_i32_0 : i32, i32, i32
  }
  func.func @transform_5(%arg0: i32) -> (i32, i32, i32) {
    %c0_i32 = arith.constant 0 : i32
    %c0_i32_0 = arith.constant 0 : i32
    %c0_i32_1 = arith.constant 0 : i32
    return %c0_i32, %arg0, %c0_i32_0 : i32, i32, i32
  }
}

</mosaic_0001>

<llo_original>
// kernel: tpu_custom_call.1
$region0: #{tpu_custom_call.1}
  #allocation0 [shape = 'u32[]', space=smem, size = 0x4, offset = 0x4, fixed_abs, tag = 'smem constant byte address 0x4 - core index']
  #allocation1 [shape = 'u32[144,128]{1,0:T(1,128)}', space=vmem, size = 0x12000, scoped, tag = 'internal scratch']
  %s0 = inlined_call_operand.vmem [shape: bf16[2,32], index: 0, kind: input, shape index: {}]
  %s1 = inlined_call_operand.vmem [shape: bf16[32,8], index: 1, kind: input, shape index: {}]
  %s2 = inlined_call_operand.vmem [shape: f32[1,8], index: 2, kind: input, shape index: {}]
  %s3 = inlined_call_operand.hbm [shape: f32[2,2,4], index: 3, kind: output, shape index: {0}]
  %s4 = inlined_call_operand.hbm [shape: f32[2,2,4], index: 4, kind: output, shape index: {1}]
  %s5 = inlined_call_operand.hbm [shape: f32[2,2,4], index: 5, kind: output, shape index: {2}]
  %6 = xla_tuple %s3, %s4, %s5
  %s7 = sld [smem:[#allocation0]]
  $region38: #{tpu_custom_call.1} parent=0
    _
  %s9 = ssub.s32 1, %s7
  %s10 = scalar_select 0, %s9, %s7
  $region1: #{tpu_custom_call.1} parent=0
    #allocation2 [shape = 'u8[2048]{0}', space=vmem, size = 0x800, scoped, tag = 'output window, operand 0, single buffered']
    #allocation3 [shape = 's32[1]{0}', space=sflag, size = 0x4, scoped, tag = 'scoped memory for tpu_custom_call.1']
    #allocation4 [shape = 'u8[2048]{0}', space=vmem, size = 0x800, scoped, tag = 'output window, operand 1, single buffered']
    #allocation5 [shape = 's32[1]{0}', space=sflag, size = 0x4, scoped, tag = 'scoped memory for tpu_custom_call.1']
    #allocation6 [shape = 'u8[2048]{0}', space=vmem, size = 0x800, scoped, tag = 'output window, operand 2, single buffered']
    %11 = vsyncpa [#allocation3], 0
    %12 = vsyncpa [#allocation5], 0
    // Predicated region
    $region2: #{tpu_custom_call.1} parent=1 // pred_check
      _
    $region3: #{tpu_custom_call.1} parent=1 // pred_check_branch
      %14 = sbr.rel (0) target = $region5
    $region4: #{tpu_custom_call.1} parent=1 // pred_region
      _
    $region5: #{tpu_custom_call.1} parent=1 // pred_fallthru
      _
    // Predicated region
    $region6: #{tpu_custom_call.1} parent=1 // pred_check
      _
    $region7: #{tpu_custom_call.1} parent=1 // pred_check_branch
      %16 = sbr.rel (0) target = $region9
    $region8: #{tpu_custom_call.1} parent=1 // pred_region
      _
    $region9: #{tpu_custom_call.1} parent=1 // pred_fallthru
      _
    // Predicated region
    $region10: #{tpu_custom_call.1} parent=1 // pred_check
      _
    $region11: #{tpu_custom_call.1} parent=1 // pred_check_branch
      %18 = sbr.rel (0) target = $region13
    $region12: #{tpu_custom_call.1} parent=1 // pred_region
      _
    $region13: #{tpu_custom_call.1} parent=1 // pred_fallthru
      _
    %v20 = vld [vmem:[%s0] sm:$0x1]
    %v21 = vld [vmem:[%s1] sm:$0xf]
    %v22 = vld [vmem:[%s1 + $0x4] sm:$0xf]
    %v23 = vld [vmem:[%s1 + $0x8] sm:$0xf]
    %v24 = vld [vmem:[%s1 + $0xc] sm:$0xf]
    %v25 = vld [vmem:[%s2] sm:$0x1]
    %v27 = vlaneseq
    %v28 = vshrl.u32 %v27, 7
    %v29 = vsub.s32 0, %v28
    %v30 = vrot.slane %v25, %v29
    %v36 = vunpack.c.l.b16 %v21
    %v37 = vunpack.c.l.b16 %v22
    %v38 = vunpack.c.l.b16 %v23
    %v39 = vunpack.c.l.b16 %v24
    %v40 = vpack.c.b16 %v37, %v36
    %v41 = vpack.c.b16 %v39, %v38
    %vm44 = vcmask 261120
    %v46 = vsel %vm44, %v20, 0
    %48 = vmatprep.subr.bf16.mxu0 0
    %49 = vmatpush1.bf16.msra.mxu0 0
    %50 = vmatprep.subr.bf16.mxu0 0
    %51 = vmatpush1.bf16.msra.mxu0 0
    %52 = vmatprep.subr.bf16.mxu0 0
    %53 = vmatpush1.bf16.msra.mxu0 0
    %54 = vmatprep.subr.bf16.mxu0 0
    %55 = vmatpush1.bf16.msra.mxu0 0
    %56 = vmatprep.subr.bf16.mxu0 0
    %57 = vmatpush1.bf16.msra.mxu0 0
    %58 = vmatprep.subr.bf16.mxu0 0
    %59 = vmatpush1.bf16.msra.mxu0 0
    %60 = vmatprep.subr.bf16.mxu0 0
    %61 = vmatpush1.bf16.msra.mxu0 %v41
    %62 = vmatprep.subr.bf16.mxu0 0
    %63 = vmatpush1.bf16.msra.mxu0 %v40
    %64 = vmatprep.subr.bf16.mxu0 0
    %65 = vmatpush2.bf16.msra.mxu0 0
    %66 = vmatprep.subr.bf16.mxu0 0
    %67 = vmatpush2.bf16.msra.mxu0 0
    %68 = vmatprep.subr.bf16.mxu0 0
    %69 = vmatpush2.bf16.msra.mxu0 0
    %70 = vmatprep.subr.bf16.mxu0 0
    %71 = vmatpush2.bf16.msra.mxu0 0
    %72 = vmatprep.subr.bf16.mxu0 0
    %73 = vmatpush2.bf16.msra.mxu0 0
    %74 = vmatprep.subr.bf16.mxu0 0
    %75 = vmatpush2.bf16.msra.mxu0 0
    %76 = vmatprep.subr.bf16.mxu0 0
    %77 = vmatpush2.bf16.msra.mxu0 0
    %78 = vmatprep.subr.bf16.mxu0 0
    %79 = vmatpush2.bf16.msra.mxu0 0
    %80 = vmatprep.mubr.bf16.mxu0 0
    %81 = vmatmul.mubr.bf16.gmra.mxu0 %v46
    %v82 = vpop.f32.mrf.mxu0
    %v83 = vadd.f32 %v30, %v82
    %v84 = vpop.f32.mrf.mxu0
    %v85 = vpop.f32.mrf.mxu0
    %v86 = vpop.f32.mrf.mxu0
    %87 = vdwg.mxu0
    %vm88 = vcmask 25600
    %v89 = vsel %vm88, %v83, -inf
    %90 = vmax.xlane.f32.xlu0 %v89
    %v91 = vpop.xlane.xlu0 %90
    %v92 = vsub.f32 %v83, %v91
    %v93 = vmul.f32 %v92, 1.442695
    %v94 = vpow.pop %v93
    %v95 = vsel %vm88, %v94, 0.0
    %96 = vadd.xlane.f32.xlu0 %v95
    %v97 = vpop.xlane.xlu0 %96
    %v98 = vrcp.pop %v97
    %v99 = vmul.f32 1.0, %v98
    %v100 = vlog2.pop %v97
    %v101 = vmul.f32 %v100, 0.6931472
    %102 = vst.msk [vmem:[#allocation2] sm:$0x3] %vm88, %v83
    %v103 = vmul.f32 %v94, %v99
    %104 = vst.msk [vmem:[#allocation4] sm:$0x3] %vm88, %v103
    %v105 = vsub.f32 %v92, %v101
    %106 = vst.msk [vmem:[#allocation6] sm:$0x3] %vm88, %v105
    %vm107 = vcmask 58400
    %v108 = vsel %vm107, %v83, -inf
    %109 = vmax.xlane.f32.xlu0 %v108
    %v110 = vpop.xlane.xlu0 %109
    %v111 = vsub.f32 %v83, %v110
    %v112 = vmul.f32 %v111, 1.442695
    %v113 = vpow.pop %v112
    %115 = vrot.lane.b32.xlu0 %v113, 124
    %v116 = vpop.permute.xlu0 %115
    %v118 = vsel %vm88, %v116, 0.0
    %119 = vadd.xlane.f32.xlu0 %v118
    %v120 = vpop.xlane.xlu0 %119
    %v121 = vrcp.pop %v120
    %v122 = vmul.f32 1.0, %v121
    %v123 = vlog2.pop %v120
    %v124 = vmul.f32 %v123, 0.6931472
    %126 = vrot.lane.b32.xlu0 %v83, 124
    %v127 = vpop.permute.xlu0 %126
    %s129 = scalar_lea.vmem [#allocation2], 2
    %130 = vst.msk [vmem:[%s129] sm:$0x3] %vm88, %v127
    %v131 = vmul.f32 %v113, %v122
    %133 = vrot.lane.b32.xlu0 %v131, 124
    %v134 = vpop.permute.xlu0 %133
    %s136 = scalar_lea.vmem [#allocation4], 2
    %137 = vst.msk [vmem:[%s136] sm:$0x3] %vm88, %v134
    %v138 = vsub.f32 %v111, %v124
    %140 = vrot.lane.b32.xlu0 %v138, 124
    %v141 = vpop.permute.xlu0 %140
    %s143 = scalar_lea.vmem [#allocation6], 2
    %144 = vst.msk [vmem:[%s143] sm:$0x3] %vm88, %v141
    // Predicated region
    $region14: #{tpu_custom_call.1} parent=1 // pred_check
      _
    $region15: #{tpu_custom_call.1} parent=1 // pred_check_branch
      %146 = sbr.rel (0) target = $region17
    $region16: #{tpu_custom_call.1} parent=1 // pred_region
      %s148 = ssub.s32 64, 64
      %149 = vsyncadd [#allocation3], %s148
      %s150 = sshll.u32 [#allocation2], 4
      %s151 = int_to_ptr.vmem [resolvable:$true] %s150
      %156 = dma.vmem_to_hbm [thread:$0]  %s151, 64, %s3, [#allocation3], 32, 32, 2
    $region17: #{tpu_custom_call.1} parent=1 // pred_fallthru
      _
    // Predicated region
    $region18: #{tpu_custom_call.1} parent=1 // pred_check
      _
    $region19: #{tpu_custom_call.1} parent=1 // pred_check_branch
      %158 = sbr.rel (0) target = $region21
    $region20: #{tpu_custom_call.1} parent=1 // pred_region
      %s160 = ssub.s32 64, 64
      %161 = vsyncadd [#allocation5], %s160
      %s162 = sshll.u32 [#allocation4], 4
      %s163 = int_to_ptr.vmem [resolvable:$true] %s162
      %168 = dma.vmem_to_hbm [thread:$0]  %s163, 64, %s4, [#allocation5], 32, 32, 2
    $region21: #{tpu_custom_call.1} parent=1 // pred_fallthru
      _
    // Predicated region
    $region22: #{tpu_custom_call.1} parent=1 // pred_check
      _
    $region23: #{tpu_custom_call.1} parent=1 // pred_check_branch
      %170 = sbr.rel (0) target = $region25
    $region24: #{tpu_custom_call.1} parent=1 // pred_region
      %s172 = ssub.s32 64, 64
      %173 = vsyncadd [#allocation5], %s172
      %s174 = sshll.u32 [#allocation6], 4
      %s175 = int_to_ptr.vmem [resolvable:$true] %s174
      %180 = dma.vmem_to_hbm [thread:$0]  %s175, 64, %s5, [#allocation5], 32, 32, 2
    $region25: #{tpu_custom_call.1} parent=1 // pred_fallthru
      _
    // Predicated region
    $region26: #{tpu_custom_call.1} parent=1 // pred_check
      _
    $region27: #{tpu_custom_call.1} parent=1 // pred_check_branch
      %182 = sbr.rel (0) target = $region29
    $region28: #{tpu_custom_call.1} parent=1 // pred_region
      %183 = dma.done [#allocation3], 64
    $region29: #{tpu_custom_call.1} parent=1 // pred_fallthru
      _
    // Predicated region
    $region30: #{tpu_custom_call.1} parent=1 // pred_check
      _
    $region31: #{tpu_custom_call.1} parent=1 // pred_check_branch
      %185 = sbr.rel (0) target = $region33
    $region32: #{tpu_custom_call.1} parent=1 // pred_region
      %186 = dma.done [#allocation5], 64
    $region33: #{tpu_custom_call.1} parent=1 // pred_fallthru
      _
    // Predicated region
    $region34: #{tpu_custom_call.1} parent=1 // pred_check
      _
    $region35: #{tpu_custom_call.1} parent=1 // pred_check_branch
      %188 = sbr.rel (0) target = $region37
    $region36: #{tpu_custom_call.1} parent=1 // pred_region
      %189 = dma.done [#allocation5], 64
    $region37: #{tpu_custom_call.1} parent=1 // pred_fallthru
      _
    %190 = vsyncpa [#allocation3], 1
    %191 = vsyncpa [#allocation5], 1

</llo_original>
